<compile_context>
chip_gen: v7x
topology: tpu7x:2x2x1
jax: 0.10.0
libtpu: 0.0.40
codegen_flags: <defaults>
</compile_context>

<pallas_src>
import math

import jax
import jax.numpy as jnp
from jax import lax
from jax.experimental import pallas as pl
from jax.experimental.pallas import tpu as pltpu


# ----------------------------------------------------------------------------
# Synthetic descriptor (stands in for stp.SegmentedTensorProduct): "u,u,u"
# ----------------------------------------------------------------------------
U = 32                               # operand extent (dim of mode 'u')
NUM_SEGMENTS = (3, 2, 4)             # segments per operand (x0, x1, out)
# paths: (i0, i1, i2, coefficient)
PATHS = (
    (0, 0, 0,  1.0),
    (1, 0, 1,  0.5),
    (2, 1, 2, -1.0),
    (0, 1, 3,  2.0),
    (1, 1, 0,  0.3),
    (2, 0, 3,  0.7),
)
# TODO(synk): operands with ndim == 0 (scalar segments broadcast over u) are not
# handled; this implements the common "3x1d" case where all operands carry 'u'.


# ----------------------------------------------------------------------------
# Small helpers
# ----------------------------------------------------------------------------
def _sublane_min(dtype):
    return {4: 8, 2: 16, 1: 32}.get(jnp.dtype(dtype).itemsize, 8)


def _ceil_mult(n, m):
    return -(-int(n) // m) * m


def _lcm(a, b):
    return a * b // math.gcd(a, b)


def _unroll_for(n_steps):
    if n_steps <= 8:
        return True
    for d in range(8, 0, -1):
        if n_steps % d == 0:
            return d
    return 1


# ----------------------------------------------------------------------------
# Kernel
# ----------------------------------------------------------------------------
def _make_kernel(u, num_segments, paths, modes, periods, rows_per_step):
    """modes[a] in {"tile","row","repeat"}; "repeat" operands are resident
    (period, d) blocks; "row" operands are resident (1, d) blocks."""
    n_out = num_segments[2]
    by_out = [[] for _ in range(n_out)]                  # static path grouping
    for (i0, i1, i2, c) in paths:
        by_out[i2].append((i0, i1, float(c)))
    used = (tuple(sorted({p[0] for p in paths})),
            tuple(sorted({p[1] for p in paths})))

    def kernel(x0_ref, x1_ref, out_ref):
        refs = (x0_ref, x1_ref)
        tb = out_ref.shape[0]                            # static block rows
        n_steps = tb // rows_per_step

        # Loop-invariant operands: loaded once per grid step; 'repeat' blocks
        # with period <= rows_per_step are pre-tiled along sublanes once.
        hoist_segs = [None, None]
        for a in (0, 1):
            mode = modes[a]
            if mode == "row":
                slab = refs[a][...].astype(jnp.float32)            # (1, d)
            elif mode == "repeat" and periods[a] <= rows_per_step:
                blk = refs[a][...].astype(jnp.float32)             # (p, d)
                reps = rows_per_step // periods[a]
                slab = blk if reps == 1 else jnp.concatenate([blk] * reps,
                                                             axis=0)
            else:
                continue
            hoist_segs[a] = {i: slab[:, i * u:(i + 1) * u] for i in used[a]}

        def segs_for(a, r0):
            if hoist_segs[a] is not None:
                return hoist_segs[a]
            if modes[a] == "repeat":        # resident block, period > rows
                p = periods[a]
                if isinstance(r0, int):
                    start = r0 % p
                else:
                    start = pl.multiple_of(lax.rem(r0, jnp.int32(p)),
                                           rows_per_step)
                slab = refs[a][pl.ds(start, rows_per_step), :].astype(
                    jnp.float32)
            else:                           # streamed 'tile' operand
                slab = refs[a][pl.ds(r0, rows_per_step), :].astype(jnp.float32)
            return {i: slab[:, i * u:(i + 1) * u] for i in used[a]}

        def body(step, carry):
            r0 = step * rows_per_step
            if not isinstance(r0, int):
                r0 = pl.multiple_of(r0, rows_per_step)
            s0 = segs_for(0, r0)
            s1 = segs_for(1, r0)
            outs = []
            for i2 in range(n_out):
                acc = None
                for (i0, i1, c) in by_out[i2]:
                    term = jnp.float32(c) * (s0[i0] * s1[i1])
                    acc = term if acc is None else acc + term
                if acc is None:
                    acc = jnp.zeros((1, u), jnp.float32)
                outs.append(acc)
            rmax = max(o.shape[0] for o in outs)
            outs = [o if o.shape[0] == rmax else jnp.broadcast_to(o, (rmax, u))
                    for o in outs]
            tile = jnp.concatenate(outs, axis=-1)        # lane-dense output
            if rmax != rows_per_step:
                tile = jnp.broadcast_to(tile, (rows_per_step, tile.shape[-1]))
            out_ref[pl.ds(r0, rows_per_step), :] = tile.astype(out_ref.dtype)
            return carry

        if n_steps <= 1:
            body(0, 0)
        else:
            lax.fori_loop(0, n_steps, body, 0, unroll=_unroll_for(n_steps))

    return kernel


# ----------------------------------------------------------------------------
# Pallas call on planned 2-D operands
# ----------------------------------------------------------------------------
def _tp_call(x0, m0, p0, x1, m1, p1, Z, *, u, num_segments, paths, batch_tile):
    d0 = num_segments[0] * u
    d1 = num_segments[1] * u
    d2 = num_segments[2] * u
    out_dtype = jnp.result_type(x0.dtype, x1.dtype)
    n_out = num_segments[2]
    used0 = sorted({p[0] for p in paths})
    used1 = sorted({p[1] for p in paths})

    min_sub = max(_sublane_min(x0.dtype), _sublane_min(x1.dtype),
                  _sublane_min(out_dtype))
    rows_cap = 8 * min_sub                 # 64 f32 / 128 bf16 / 256 int8

    # --- batch tile (no wrapper pad; Pallas masks the ragged last block) ----
    tb = min(int(batch_tile), _ceil_mult(Z, min_sub))
    if Z > min_sub:                        # allow >=2 blocks (v7x megacore)
        tb = min(tb, _ceil_mult((Z + 1) // 2, min_sub))
    tb = max(min_sub, tb)

    # --- rows-per-chunk from a rough vreg budget (quarter-width slices) -----
    units = len(used0) + len(used1) + n_out + 3
    rows = (48 * 8) // units
    rows = max(min_sub, (rows // min_sub) * min_sub)
    rows = min(rows, rows_cap, tb)

    # --- 'repeat' operands: keep resident when period-compatible, else tile -
    ops = [[x0, m0, int(p0)], [x1, m1, int(p1)]]
    resident = [False, False]
    for a in (0, 1):
        if ops[a][1] != "repeat":
            continue
        p = ops[a][2]
        if p % min_sub == 0 and p <= 2048:
            if p <= rows:
                rows = (rows // p) * p
            elif p % rows != 0:
                rows = math.gcd(rows, p)
            resident[a] = True
    for a in (0, 1):
        if ops[a][1] != "repeat":
            continue
        p = ops[a][2]
        if not (resident[a] and (rows % p == 0 or p % rows == 0)):
            # materialize the repetition in HBM (simple row tiling)
            ops[a][0] = jnp.tile(ops[a][0], (Z // p, 1))
            ops[a][1] = "tile"
            ops[a][2] = Z
            resident[a] = False

    # tb must be a common multiple of the chunk size and the resident periods
    L = rows
    for a in (0, 1):
        if resident[a]:
            L = _lcm(L, ops[a][2])
    tb = max(L, (tb // L) * L)
    grid = pl.cdiv(Z, tb)

    (x0, m0, p0), (x1, m1, p1) = (tuple(ops[0]), tuple(ops[1]))

    def spec_for(mode, period, d, res):
        if mode == "row":
            return pl.BlockSpec((1, d), lambda i: (0, 0))
        if mode == "repeat" and res:
            return pl.BlockSpec((period, d), lambda i: (0, 0))   # resident
        return pl.BlockSpec((tb, d), lambda i: (i, 0))

    kernel = _make_kernel(u, num_segments, paths, (m0, m1), (p0, p1), rows)

    # VMEM budget: double-buffered blocks + headroom, capped below the smallest
    # per-core VMEM (v7x: 64 MiB).
    def blk_rows(mode, period, res):
        if mode == "row":
            return 1
        if mode == "repeat" and res:
            return period
        return tb
    in_bytes = (blk_rows(m0, p0, resident[0]) * d0 * jnp.dtype(x0.dtype).itemsize
                + blk_rows(m1, p1, resident[1]) * d1 * jnp.dtype(x1.dtype).itemsize)
    out_bytes = tb * d2 * jnp.dtype(out_dtype).itemsize
    vmem_limit = int(min(max(4 * (in_bytes + out_bytes) + (8 << 20), 16 << 20),
                         48 << 20))

    return pl.pallas_call(
        kernel,
        out_shape=jax.ShapeDtypeStruct((Z, d2), out_dtype),
        grid_spec=pltpu.PrefetchScalarGridSpec(
            num_scalar_prefetch=0,
            grid=(grid,),
            in_specs=[spec_for(m0, p0, d0, resident[0]),
                      spec_for(m1, p1, d1, resident[1])],
            out_specs=pl.BlockSpec((tb, d2), lambda i: (i, 0)),
        ),
        compiler_params=pltpu.CompilerParams(
            dimension_semantics=("parallel",),
            vmem_limit_bytes=vmem_limit),
    )(x0, x1)


# ----------------------------------------------------------------------------
# Wrapper mirroring TensorProductUniform3x1d.forward (broadcast leading dims)
# ----------------------------------------------------------------------------
def _plan_operand(x, shape, Z):
    """Returns (array_2d, mode, period); broadcasts are only materialized when
    they cannot be expressed via a resident block / BlockSpec."""
    d = x.shape[-1]
    lead = tuple(int(s) for s in x.shape[:-1])
    Zi = 1
    for s in lead:
        Zi *= s
    if Zi == Z:
        return x.reshape((max(Z, 1), d)), "tile", Z
    if Zi == 1:
        return x.reshape((1, d)), "row", 1
    stripped = lead
    while stripped and stripped[0] == 1:
        stripped = stripped[1:]
    shape_t = tuple(int(s) for s in shape)
    if (stripped and len(stripped) <= len(shape_t)
            and shape_t[len(shape_t) - len(stripped):] == stripped
            and Z % Zi == 0):
        return x.reshape((Zi, d)), "repeat", Zi
    # TODO(synk): general (non-suffix) leading-dim broadcasts are materialized.
    xb = jnp.broadcast_to(x, shape_t + (d,)).reshape((max(Z, 1), d))
    return xb, "tile", Z


def tensor_product_uniform_3x1d(x0, x1, *, u=U, num_segments=NUM_SEGMENTS,
                                paths=PATHS, batch_tile=1024):
    """Mirrors TensorProductUniform3x1d.forward."""
    assert x0.ndim >= 1 and x1.ndim >= 1
    shape = tuple(int(s) for s in
                  jnp.broadcast_shapes(x0.shape[:-1], x1.shape[:-1]))
    Z = 1
    for s in shape:
        Z *= s
    Z = max(Z, 1)

    x0f, m0, p0 = _plan_operand(x0, shape, Z)
    x1f, m1, p1 = _plan_operand(x1, shape, Z)

    out = _tp_call(x0f, m0, p0, x1f, m1, p1, Z,
                   u=u, num_segments=num_segments, paths=paths,
                   batch_tile=batch_tile)
    return out.reshape(shape + (out.shape[-1],))


# ----------------------------------------------------------------------------
# Pure-JAX reference
# ----------------------------------------------------------------------------
def _reference(x0, x1, *, u=U, num_segments=NUM_SEGMENTS, paths=PATHS):
    shape = tuple(int(s) for s in
                  jnp.broadcast_shapes(x0.shape[:-1], x1.shape[:-1]))
    x0b = jnp.broadcast_to(x0, shape + (x0.shape[-1],)).astype(jnp.float32)
    x1b = jnp.broadcast_to(x1, shape + (x1.shape[-1],)).astype(jnp.float32)
    out = jnp.zeros(shape + (num_segments[2] * u,), jnp.float32)
    for (i0, i1, i2, c) in paths:
        out = out.at[..., i2 * u:(i2 + 1) * u].add(
            c * x0b[..., i0 * u:(i0 + 1) * u] * x1b[..., i1 * u:(i1 + 1) * u])
    return out.astype(jnp.result_type(x0.dtype, x1.dtype))


if __name__ == "__main__":
    key = jax.random.PRNGKey(0)
    k0, k1, k2, k3, k4 = jax.random.split(key, 5)

    # Case 1: partial leading-dim broadcast ((2,8) vs (8,)) — x1 stays resident
    # as one (8, d1) block instead of being duplicated in HBM.
    x0 = jax.random.normal(k0, (2, 8, NUM_SEGMENTS[0] * U), dtype=jnp.float32)
    x1 = jax.random.normal(k1, (8, NUM_SEGMENTS[1] * U), dtype=jnp.float32)
    out = jax.block_until_ready(tensor_product_uniform_3x1d(x0, x1))
    ref = _reference(x0, x1)
    assert out.shape == (2, 8, NUM_SEGMENTS[2] * U), out.shape
    assert jnp.allclose(out, ref, atol=1e-5, rtol=1e-5), "mismatch (case 1)"

    # Case 2: fully-broadcast 1-D x1 + batch size not a multiple of the tile
    # (masked ragged output block, no wrapper pad).
    y0 = jax.random.normal(k2, (5, NUM_SEGMENTS[0] * U), dtype=jnp.float32)
    y1 = jax.random.normal(k3, (NUM_SEGMENTS[1] * U,), dtype=jnp.float32)
    out2 = jax.block_until_ready(tensor_product_uniform_3x1d(y0, y1))
    ref2 = _reference(y0, y1)
    assert out2.shape == (5, NUM_SEGMENTS[2] * U), out2.shape
    assert jnp.allclose(out2, ref2, atol=1e-5, rtol=1e-5), "mismatch (case 2)"

    # Case 3: resident repeat with in-kernel tiling (period 8 < chunk rows) and
    # a ragged last block (Z=40, tb=24).
    z0 = jax.random.normal(k4, (5, 8, NUM_SEGMENTS[0] * U), dtype=jnp.float32)
    out3 = jax.block_until_ready(tensor_product_uniform_3x1d(z0, x1))
    ref3 = _reference(z0, x1)
    assert out3.shape == (5, 8, NUM_SEGMENTS[2] * U), out3.shape
    assert jnp.allclose(out3, ref3, atol=1e-5, rtol=1e-5), "mismatch (case 3)"

    print("KERNEL_OK")
</pallas_src>

<mosaic_0001>
module attributes {stable_mosaic.version = 11 : i64} {
  func.func @kernel(%arg0: i32, %arg1: memref<8x96xf32, #tpu.memory_space<vmem>>, %arg2: memref<8x64xf32, #tpu.memory_space<vmem>>, %arg3: memref<8x128xf32, #tpu.memory_space<vmem>>) attributes {dimension_semantics = [#tpu.dimension_semantics<parallel>], iteration_bounds = array<i64: 2>, scalar_prefetch = 0 : i64, scratch_operands = 0 : i64, tpu.core_type = #tpu.core_type<tc>, window_params = [{transform_indices = @transform_0, window_bounds = array<i64: 8, 96>}, {pipeline_mode = #tpu.pipeline_mode<synchronous>, transform_indices = @transform_1, window_bounds = array<i64: 8, 64>}, {transform_indices = @transform_2, window_bounds = array<i64: 8, 128>}]} {
    %c0 = arith.constant 0 : index
    %c0_0 = arith.constant 0 : index
    %0 = vector.load %arg2[%c0, %c0_0] : memref<8x64xf32, #tpu.memory_space<vmem>>, vector<8x64xf32>
    %1 = vector.extract_strided_slice %0 {offsets = [0, 0], sizes = [8, 32], strides = [1, 1]} : vector<8x64xf32> to vector<8x32xf32>
    %2 = vector.extract_strided_slice %0 {offsets = [0, 32], sizes = [8, 32], strides = [1, 1]} : vector<8x64xf32> to vector<8x32xf32>
    %c0_1 = arith.constant 0 : index
    %c0_2 = arith.constant 0 : index
    %3 = vector.load %arg1[%c0_1, %c0_2] : memref<8x96xf32, #tpu.memory_space<vmem>>, vector<8x96xf32>
    %4 = vector.extract_strided_slice %3 {offsets = [0, 0], sizes = [8, 32], strides = [1, 1]} : vector<8x96xf32> to vector<8x32xf32>
    %5 = vector.extract_strided_slice %3 {offsets = [0, 32], sizes = [8, 32], strides = [1, 1]} : vector<8x96xf32> to vector<8x32xf32>
    %6 = vector.extract_strided_slice %3 {offsets = [0, 64], sizes = [8, 32], strides = [1, 1]} : vector<8x96xf32> to vector<8x32xf32>
    %7 = arith.mulf %4, %1 : vector<8x32xf32>
    %cst = arith.constant 1.000000e+00 : f32
    %8 = vector.broadcast %cst : f32 to vector<8x32xf32>
    %9 = arith.mulf %8, %7 : vector<8x32xf32>
    %10 = arith.mulf %5, %2 : vector<8x32xf32>
    %cst_3 = arith.constant 3.000000e-01 : f32
    %11 = vector.broadcast %cst_3 : f32 to vector<8x32xf32>
    %12 = arith.mulf %11, %10 : vector<8x32xf32>
    %13 = arith.addf %9, %12 : vector<8x32xf32>
    %14 = arith.mulf %5, %1 : vector<8x32xf32>
    %cst_4 = arith.constant 5.000000e-01 : f32
    %15 = vector.broadcast %cst_4 : f32 to vector<8x32xf32>
    %16 = arith.mulf %15, %14 : vector<8x32xf32>
    %17 = arith.mulf %6, %2 : vector<8x32xf32>
    %cst_5 = arith.constant -1.000000e+00 : f32
    %18 = vector.broadcast %cst_5 : f32 to vector<8x32xf32>
    %19 = arith.mulf %18, %17 : vector<8x32xf32>
    %20 = arith.mulf %4, %2 : vector<8x32xf32>
    %cst_6 = arith.constant 2.000000e+00 : f32
    %21 = vector.broadcast %cst_6 : f32 to vector<8x32xf32>
    %22 = arith.mulf %21, %20 : vector<8x32xf32>
    %23 = arith.mulf %6, %1 : vector<8x32xf32>
    %cst_7 = arith.constant 0.699999988 : f32
    %24 = vector.broadcast %cst_7 : f32 to vector<8x32xf32>
    %25 = arith.mulf %24, %23 : vector<8x32xf32>
    %26 = arith.addf %22, %25 : vector<8x32xf32>
    %27 = tpu.concatenate %13, %16, %19, %26 in 1 : vector<8x32xf32>, vector<8x32xf32>, vector<8x32xf32>, vector<8x32xf32> -> vector<8x128xf32>
    %c0_8 = arith.constant 0 : index
    %c0_9 = arith.constant 0 : index
    %28 = vector.load %arg3[%c0_8, %c0_9] : memref<8x128xf32, #tpu.memory_space<vmem>>, vector<8x128xf32>
    tpu.vector_store %arg3[%c0_8, %c0_9], %27 {strides = array<i32>} : memref<8x128xf32, #tpu.memory_space<vmem>>, vector<8x128xf32>,
    return
  }
  func.func @transform_0(%arg0: i32) -> (i32, i32) {
    %c0_i32 = arith.constant 0 : i32
    %c0_i32_0 = arith.constant 0 : i32
    return %arg0, %c0_i32 : i32, i32
  }
  func.func @transform_1(%arg0: i32) -> (i32, i32) {
    %c0_i32 = arith.constant 0 : i32
    %c0_i32_0 = arith.constant 0 : i32
    %c0_i32_1 = arith.constant 0 : i32
    return %c0_i32, %c0_i32_0 : i32, i32
  }
  func.func @transform_2(%arg0: i32) -> (i32, i32) {
    %c0_i32 = arith.constant 0 : i32
    %c0_i32_0 = arith.constant 0 : i32
    return %arg0, %c0_i32 : i32, i32
  }
}

</mosaic_0001>

<llo_original>
// kernel: tpu_custom_call.1
$region0: #{tpu_custom_call.1}
  #allocation0 [shape = 'u32[]', space=smem, size = 0x4, offset = 0x4, fixed_abs, tag = 'smem constant byte address 0x4 - core index']
  #allocation1 [shape = 'u32[144,128]{1,0:T(1,128)}', space=vmem, size = 0x12000, scoped, tag = 'internal scratch']
  %s0 = inlined_call_operand.hbm [shape: f32[16,96], index: 0, kind: input, shape index: {}]
  %s1 = inlined_call_operand.hbm [shape: f32[8,64], index: 1, kind: input, shape index: {}]
  %s2 = inlined_call_operand.hbm [shape: f32[16,128], index: 2, kind: output, shape index: {}]
  %s3 = sld [smem:[#allocation0]]
  $region49: #{tpu_custom_call.1} parent=0
    _
  %s5 = ssub.s32 1, %s3
  %s6 = scalar_select 0, %s5, %s3
  $region1: #{tpu_custom_call.1} parent=0
    #allocation2 [shape = 'u8[8192]{0}', space=vmem, size = 0x2000, scoped, tag = 'input window, operand 0']
    #allocation3 [shape = 's32[2]{0}', space=sflag, size = 0x8, scoped, tag = 'scoped memory for tpu_custom_call.1']
    #allocation4 [shape = 's32[2]{0}', space=sflag, size = 0x8, scoped, tag = 'scoped memory for tpu_custom_call.1']
    #allocation5 [shape = 'u8[4096]{0}', space=vmem, size = 0x1000, scoped, tag = 'input window, operand 1, single buffered']
    #allocation6 [shape = 's32[1]{0}', space=sflag, size = 0x4, scoped, tag = 'scoped memory for tpu_custom_call.1']
    #allocation7 [shape = 'u8[8192]{0}', space=vmem, size = 0x2000, scoped, tag = 'output window, operand 0']
    %7 = vsyncpa [#allocation3], 0
    %s8 = scalar_lea.sflag [#allocation3], 1
    %9 = vsyncpa %s8, 0
    %10 = vsyncpa [#allocation6], 0
    %11 = vsyncpa [#allocation4], 0
    %s12 = scalar_lea.sflag [#allocation4], 1
    %13 = vsyncpa %s12, 0
    loop: start=0, step=1, limit=4
    $region2: #{tpu_custom_call.1} parent=1 // loop_pre_header
      _
    $region3: #{tpu_custom_call.1} parent=1 // loop_header
      %s15 = sphi 0, %s19
      %p16 = scmp.ge.s32.totalorder %s15, 4
      %s25 = sphi 0, %s27
      %s28 = sphi 0, %s25
      %s29 = sphi 0, %s28
      %s45 = sphi 0, %s29
      %s49 = sphi 0, %s49
      %s51 = sphi 0, %s49
      %s52 = sphi 0, %s51
      %s66 = sphi 0, %s52
      %s72 = sphi 0, %s74
      %s75 = sphi 0, %s72
      %s76 = sphi 0, %s75
      %s92 = sphi 0, %s76
    $region4: #{tpu_custom_call.1} parent=1 // loop_header_branch
      %18 = sbr.rel (%p16) target = $region8
    $region5: #{tpu_custom_call.1} parent=1 // loop_body
      %s20 = ssub.s32 %s15, 1
      %s21 = ssub.s32 %s15, 2
      %s22 = sadd.s32 %s15, 1
      %s23 = ssub.s32 %s15, %s22
      %p24 = scmp.eq.s32.totalorder %s23, 0
      %s26 = sadd.s32 %s25, 1
      %s27 = scalar_select %p24, %s25, %s26
      %p30 = pneg %p24
      %p31 = scmp.eq.s32.totalorder %s15, 1
      %p32 = por %p30, %p31
      %p33 = scmp.ne.s32.totalorder %s25, %s28
      %p34 = scmp.eq.s32.totalorder %s15, 0
      %p35 = por %p33, %p34
      %p36 = scmp.ne.s32.totalorder %s25, %s28
      %p37 = scmp.eq.s32.totalorder %s20, 1
      %p38 = por %p36, %p37
      %p39 = scmp.ne.s32.totalorder %s28, %s29
      %p40 = scmp.eq.s32.totalorder %s20, 0
      %p41 = por %p39, %p40
      %p42 = scmp.ne.s32.totalorder %s28, %s29
      %p43 = scmp.eq.s32.totalorder %s21, 1
      %p44 = por %p42, %p43
      %p46 = scmp.ne.s32.totalorder %s29, %s45
      %p47 = scmp.eq.s32.totalorder %s21, 0
      %p48 = por %p46, %p47
      %s50 = sadd.s32 %s49, 1
      %p53 = scmp.eq.s32.totalorder %s15, 1
      %p54 = scmp.ne.s32.totalorder %s49, %s51
      %p55 = scmp.eq.s32.totalorder %s15, 0
      %p56 = por %p54, %p55
      %p57 = scmp.ne.s32.totalorder %s49, %s51
      %p58 = scmp.eq.s32.totalorder %s20, 1
      %p59 = por %p57, %p58
      %p60 = scmp.ne.s32.totalorder %s51, %s52
      %p61 = scmp.eq.s32.totalorder %s20, 0
      %p62 = por %p60, %p61
      %p63 = scmp.ne.s32.totalorder %s51, %s52
      %p64 = scmp.eq.s32.totalorder %s21, 1
      %p65 = por %p63, %p64
      %p67 = scmp.ne.s32.totalorder %s52, %s66
      %p68 = scmp.eq.s32.totalorder %s21, 0
      %p69 = por %p67, %p68
      %s70 = ssub.s32 %s15, %s22
      %p71 = scmp.eq.s32.totalorder %s70, 0
      %s73 = sadd.s32 %s72, 1
      %s74 = scalar_select %p71, %s72, %s73
      %p77 = pneg %p71
      %p78 = scmp.eq.s32.totalorder %s15, 1
      %p79 = por %p77, %p78
      %p80 = scmp.ne.s32.totalorder %s72, %s75
      %p81 = scmp.eq.s32.totalorder %s15, 0
      %p82 = por %p80, %p81
      %p83 = scmp.ne.s32.totalorder %s72, %s75
      %p84 = scmp.eq.s32.totalorder %s20, 1
      %p85 = por %p83, %p84
      %p86 = scmp.ne.s32.totalorder %s75, %s76
      %p87 = scmp.eq.s32.totalorder %s20, 0
      %p88 = por %p86, %p87
      %p89 = scmp.ne.s32.totalorder %s75, %s76
      %p90 = scmp.eq.s32.totalorder %s21, 1
      %p91 = por %p89, %p90
      %p93 = scmp.ne.s32.totalorder %s76, %s92
      %p94 = scmp.eq.s32.totalorder %s21, 0
      %p95 = por %p93, %p94
      %p96 = scmp.le.s32.totalorder 1, %s15
      %p97 = scmp.lt.s32.totalorder %s15, 3
      %p98 = pnand %p96, %p97
      %p99 = pneg %p98
      // Predicated region
      $region9: #{tpu_custom_call.1} parent=5 // pred_check
        _
      $region10: #{tpu_custom_call.1} parent=5 // pred_check_branch
        %101 = sbr.rel (%p98) target = $region12
      $region11: #{tpu_custom_call.1} parent=5 // pred_region
        %s102 = ssub.s32 %s15, 1
        // Predicated region
        $region13: #{tpu_custom_call.1} parent=11 // pred_check
          %p103 = pneg %p62
        $region14: #{tpu_custom_call.1} parent=11 // pred_check_branch
          %105 = sbr.rel (%p103) target = $region16
        $region15: #{tpu_custom_call.1} parent=11 // pred_region
          %s107 = ssub.s32 128, 128
          %108 = vsyncadd [#allocation6], %s107
          %s110 = sshll.u32 [#allocation5], 4
          %s111 = int_to_ptr.vmem [resolvable:$true] %s110
          %113 = dma.hbm_to_vmem [thread:$0]  %s1, 128, %s111, [#allocation6]
        $region16: #{tpu_custom_call.1} parent=11 // pred_fallthru
          _
      $region12: #{tpu_custom_call.1} parent=5 // pred_fallthru
        _
      %p114 = scmp.lt.s32.totalorder %s15, 2
      // Predicated region
      $region17: #{tpu_custom_call.1} parent=5 // pred_check
        %p115 = pneg %p114
      $region18: #{tpu_custom_call.1} parent=5 // pred_check_branch
        %117 = sbr.rel (%p115) target = $region20
      $region19: #{tpu_custom_call.1} parent=5 // pred_region
        // Predicated region
        $region21: #{tpu_custom_call.1} parent=19 // pred_check
          %p118 = pneg %p35
        $region22: #{tpu_custom_call.1} parent=19 // pred_check_branch
          %120 = sbr.rel (%p118) target = $region24
        $region23: #{tpu_custom_call.1} parent=19 // pred_region
          %s121 = sand.u32 %s25, 1
          %s122 = scalar_lea.sflag [#allocation3], %s121
          %s123 = sand.u32 %s25, 1
          %s124 = smul.addr %s123, 8
          %s125 = scalar_lea.vmem [#allocation2], %s124
          %s127 = ssub.s32 128, 128
          %128 = vsyncadd %s122, %s127
          %s129 = smul.addr %s15, 128
          %s130 = scalar_lea.hbm %s0, %s129
          %s132 = sshll.u32 %s125, 4
          %s133 = int_to_ptr.vmem [resolvable:$true] %s132
          %135 = dma.hbm_to_vmem [thread:$0]  %s130, 128, %s133, %s122
        $region24: #{tpu_custom_call.1} parent=19 // pred_fallthru
          _
      $region20: #{tpu_custom_call.1} parent=5 // pred_fallthru
        _
      %p136 = scmp.le.s32.totalorder 1, %s15
      %p137 = scmp.lt.s32.totalorder %s15, 3
      %p138 = pnand %p136, %p137
      %p139 = pneg %p138
      // Predicated region
      $region25: #{tpu_custom_call.1} parent=5 // pred_check
        _
      $region26: #{tpu_custom_call.1} parent=5 // pred_check_branch
        %141 = sbr.rel (%p138) target = $region28
      $region27: #{tpu_custom_call.1} parent=5 // pred_region
        %s142 = ssub.s32 %s15, 1
        %s143 = sand.u32 %s28, 1
        %s144 = scalar_lea.sflag [#allocation3], %s143
        %s145 = sand.u32 %s28, 1
        %s146 = smul.addr %s145, 8
        %s147 = scalar_lea.vmem [#allocation2], %s146
        // Predicated region
        $region29: #{tpu_custom_call.1} parent=27 // pred_check
          %p148 = pneg %p41
        $region30: #{tpu_custom_call.1} parent=27 // pred_check_branch
          %150 = sbr.rel (%p148) target = $region32
        $region31: #{tpu_custom_call.1} parent=27 // pred_region
          %151 = dma.done %s144, 128
        $region32: #{tpu_custom_call.1} parent=27 // pred_fallthru
          _
        // Predicated region
        $region33: #{tpu_custom_call.1} parent=27 // pred_check
          %p152 = pneg %p62
        $region34: #{tpu_custom_call.1} parent=27 // pred_check_branch
          %154 = sbr.rel (%p152) target = $region36
        $region35: #{tpu_custom_call.1} parent=27 // pred_region
          %155 = dma.done [#allocation6], 128
        $region36: #{tpu_custom_call.1} parent=27 // pred_fallthru
          _
        %s156 = sand.u32 %s28, 1
        %s157 = scalar_lea.sflag [#allocation3], %s156
        %s158 = sand.u32 %s28, 1
        %s159 = smul.addr %s158, 8
        %s160 = scalar_lea.vmem [#allocation2], %s159
        %p161 = pneg %p41
        %p162 = pneg %p38
        %p163 = pneg %p62
        %p164 = pneg %p59
        %p165 = pneg %p88
        %p166 = pneg %p85
        %s167 = sand.u32 %s75, 1
        %s168 = scalar_lea.sflag [#allocation4], %s167
        %s169 = sand.u32 %s75, 1
        %s170 = smul.addr %s169, 8
        %s171 = scalar_lea.vmem [#allocation7], %s170
        %v172 = vld [vmem:[#allocation5] sm:$0xff]
        %v173 = vld [vmem:[%s147] sm:$0xff]
        %v174 = vmul.f32 %v173, %v172
        %v175 = vmul.f32 %v174, 0.3
        %177 = vrot.lane.b32.xlu0 %v175, 96
        %v178 = vpop.permute.xlu0 %177
        %v180 = vadd.f32 %v174, %v178
        %182 = vrot.lane.b32.xlu0 %v172, 32
        %v183 = vpop.permute.xlu0 %182
        %v185 = vmul.f32 %v173, %v183
        %v186 = vmul.f32 %v185, 0.5
        %v187 = vmul.f32 %v185, -1.0
        %188 = vrot.lane.b32.xlu0 %v172, 96
        %v189 = vpop.permute.xlu0 %188
        %v191 = vmul.f32 %v173, %v189
        %v192 = vmul.f32 %v191, 2.0
        %193 = vrot.lane.b32.xlu0 %v172, 64
        %v194 = vpop.permute.xlu0 %193
        %v196 = vmul.f32 %v173, %v194
        %v197 = vmul.f32 %v196, 0.7
        %199 = vrot.lane.b32.xlu0 %v197, 64
        %v200 = vpop.permute.xlu0 %199
        %v202 = vadd.f32 %v192, %v200
        %204 = vrot.lane.b32.xlu0 %v202, 96
        %v205 = vpop.permute.xlu0 %204
        %vm207 = vcmask 261120
        %v208 = vsel %vm207, %v180, %v186
        %vm209 = vcmask 523264
        %v210 = vsel %vm209, %v208, %v187
        %vm211 = vcmask 785408
        %v212 = vsel %vm211, %v210, %v205
        %213 = vst [vmem:[%s171] sm:$0xff] %v212
        %s214 = sand.u32 %s75, 1
        %s215 = scalar_lea.sflag [#allocation4], %s214
        %s216 = sand.u32 %s75, 1
        %s217 = smul.addr %s216, 8
        %s218 = scalar_lea.vmem [#allocation7], %s217
        // Predicated region
        $region37: #{tpu_custom_call.1} parent=27 // pred_check
          %p219 = pneg %p85
        $region38: #{tpu_custom_call.1} parent=27 // pred_check_branch
          %221 = sbr.rel (%p219) target = $region40
        $region39: #{tpu_custom_call.1} parent=27 // pred_region
          %s223 = ssub.s32 128, 128
          %224 = vsyncadd %s215, %s223
          %s225 = smul.addr %s20, 128
          %s226 = scalar_lea.hbm %s2, %s225
          %s228 = sshll.u32 %s218, 4
          %s229 = int_to_ptr.vmem [resolvable:$true] %s228
          %231 = dma.vmem_to_hbm [thread:$0]  %s229, 128, %s226, %s215
        $region40: #{tpu_custom_call.1} parent=27 // pred_fallthru
          _
      $region28: #{tpu_custom_call.1} parent=5 // pred_fallthru
        _
      %p232 = scmp.le.s32.totalorder 2, %s15
      // Predicated region
      $region41: #{tpu_custom_call.1} parent=5 // pred_check
        %p233 = pneg %p232
      $region42: #{tpu_custom_call.1} parent=5 // pred_check_branch
        %235 = sbr.rel (%p233) target = $region44
      $region43: #{tpu_custom_call.1} parent=5 // pred_region
        %s236 = ssub.s32 %s15, 2
        // Predicated region
        $region45: #{tpu_custom_call.1} parent=43 // pred_check
          %p237 = pneg %p91
        $region46: #{tpu_custom_call.1} parent=43 // pred_check_branch
          %239 = sbr.rel (%p237) target = $region48
        $region47: #{tpu_custom_call.1} parent=43 // pred_region
          %s240 = sand.u32 %s76, 1
          %s241 = scalar_lea.sflag [#allocation4], %s240
          %s242 = sand.u32 %s76, 1
          %s243 = smul.addr %s242, 8
          %s244 = scalar_lea.vmem [#allocation7], %s243
          %245 = dma.done %s241, 128
        $region48: #{tpu_custom_call.1} parent=43 // pred_fallthru
          _
      $region44: #{tpu_custom_call.1} parent=5 // pred_fallthru
        _
    $region6: #{tpu_custom_call.1} parent=1 // loop_footer
      %s19 = sadd.s32 1, %s15
    $region7: #{tpu_custom_call.1} parent=1 // loop_footer_branch
      %14 = sbr.rel target = $region3
    $region8: #{tpu_custom_call.1} parent=1 // loop_exit
      _
    %246 = vsyncpa [#allocation3], 1
    %s247 = scalar_lea.sflag [#allocation3], 1
    %248 = vsyncpa %s247, 1
    %249 = vsyncpa [#allocation6], 1
    %250 = vsyncpa [#allocation4], 1
    %s251 = scalar_lea.sflag [#allocation4], 1
    %252 = vsyncpa %s251, 1

</llo_original>
